<compile_context>
chip_gen: v7x
topology: tpu7x:2x2x1
jax: 0.10.0
libtpu: 0.0.40
codegen_flags: <defaults>
</compile_context>

<pallas_src>
import jax
import jax.numpy as jnp
from jax.experimental import pallas as pl
from jax.experimental.pallas import tpu as pltpu


def _conv1x1_kernel(x_ref, w_ref, o_ref):
    # x_ref: (C_in, tile)   w_ref: (n_cls, C_in)   o_ref: (n_cls, tile)
    # Contraction is over C_in; lane axis (last dim) is the spatial tile, so
    # the output store is a dense, unmasked vst.
    o_ref[...] = jnp.dot(
        w_ref[...], x_ref[...], preferred_element_type=jnp.float32
    ).astype(o_ref.dtype)


def _pick_spatial_tile(hw, c_in, n_cls, dtype_bytes,
                       target=8192, vmem_budget=16 * 1024 * 1024):
    """Largest spatial tile that (a) divides H*W, (b) is a multiple of 128,
    (c) fits a double-buffered (x tile + out tile) pair in the VMEM budget,
    and (d) is at most `target`. Falls back to the full spatial extent
    (always a legal block) if H*W is not a multiple of 128."""
    if hw % 128 != 0:
        return hw
    # Double-buffered x tile (C_in * tile) + out tile (n_cls * tile).
    max_by_vmem = vmem_budget // (2 * (c_in + n_cls) * dtype_bytes)
    cap = max(128, min(target, max_by_vmem, hw))
    for t in range((cap // 128) * 128, 127, -128):
        if hw % t == 0:
            return t
    return hw


def mednext_deep_supervision(x_nchw, weight_oi11, *, spatial_tile=None):
    """Forward pass of MedNeXtDeepSupervision (1x1 conv, no bias).

    x_nchw:      (N, C_in, H, W)
    weight_oi11: (num_classes, C_in, 1, 1)  -- PyTorch Conv2d weight layout
    returns:     (N, num_classes, H, W)
    """
    N, C_in, H, W = x_nchw.shape
    n_cls = weight_oi11.shape[0]
    HW = H * W

    # Free, contiguous reshapes only -- no transposes, no padding.
    x3 = x_nchw.reshape(N, C_in, HW)
    w = weight_oi11.reshape(n_cls, C_in)

    dtype_bytes = jnp.dtype(x3.dtype).itemsize
    tile = spatial_tile or _pick_spatial_tile(HW, C_in, n_cls, dtype_bytes)
    grid = (N, HW // tile)

    cost = pl.CostEstimate(
        flops=2 * N * HW * C_in * n_cls,
        transcendentals=0,
        bytes_accessed=(N * HW * C_in + N * HW * n_cls + n_cls * C_in)
        * dtype_bytes,
    )

    y3 = pl.pallas_call(
        _conv1x1_kernel,
        out_shape=jax.ShapeDtypeStruct((N, n_cls, HW), x3.dtype),
        grid_spec=pl.GridSpec(
            grid=grid,
            in_specs=[
                # X tile: (1, C_in, tile), batch dim squeezed away in-kernel.
                pl.BlockSpec((None, C_in, tile), lambda n, s: (n, 0, s)),
                # Weight: full, constant index_map -> stays resident in VMEM.
                pl.BlockSpec((n_cls, C_in), lambda n, s: (0, 0)),
            ],
            # Output tile: (1, n_cls, tile); last dim is lane-dense.
            out_specs=pl.BlockSpec((None, n_cls, tile), lambda n, s: (n, 0, s)),
        ),
        compiler_params=pltpu.CompilerParams(
            dimension_semantics=("parallel", "parallel"),
            vmem_limit_bytes=48 * 1024 * 1024,
        ),
        cost_estimate=cost,
    )(x3, w)

    return y3.reshape(N, n_cls, H, W)


if __name__ == "__main__":
    # Small, deterministic setup: batch=2, in_channels=4, spatial=16x16, 3 classes.
    key = jax.random.PRNGKey(0)
    kx, kw = jax.random.split(key)

    N, C_in, H, W = 2, 4, 16, 16
    num_classes = 3

    x = jax.random.normal(kx, (N, C_in, H, W), dtype=jnp.float32)
    # Deterministic weight init (Kaiming-uniform-like bound, as nn.Conv2d default).
    fan_in = C_in * 1 * 1
    bound = (1.0 / fan_in) ** 0.5
    weight = jax.random.uniform(
        kw, (num_classes, C_in, 1, 1), dtype=jnp.float32, minval=-bound, maxval=bound
    )

    out = mednext_deep_supervision(x, weight)
    out = jax.block_until_ready(out)

    # Pure-JAX reference (1x1 conv == channel contraction).
    ref = jnp.einsum("nchw,oc->nohw", x, weight[:, :, 0, 0])
    assert out.shape == (N, num_classes, H, W)
    assert jnp.allclose(out, ref, atol=1e-5, rtol=1e-5)

    print("KERNEL_OK")
</pallas_src>

<mosaic_0001>
module attributes {stable_mosaic.version = 11 : i64} {
  func.func @_conv1x1_kernel(%arg0: i32, %arg1: i32, %arg2: memref<1x4x256xf32, #tpu.memory_space<vmem>>, %arg3: memref<3x4xf32, #tpu.memory_space<vmem>>, %arg4: memref<1x3x256xf32, #tpu.memory_space<vmem>>) attributes {dimension_semantics = [#tpu.dimension_semantics<parallel>, #tpu.dimension_semantics<parallel>], iteration_bounds = array<i64: 2, 1>, scalar_prefetch = 0 : i64, scratch_operands = 0 : i64, tpu.core_type = #tpu.core_type<tc>, window_params = [{transform_indices = @transform_0, window_bounds = array<i64: 1, 4, 256>}, {pipeline_mode = #tpu.pipeline_mode<synchronous>, transform_indices = @transform_1, window_bounds = array<i64: 3, 4>}, {transform_indices = @transform_2, window_bounds = array<i64: 1, 3, 256>}]} {
    %c0 = arith.constant 0 : index
    %c0_0 = arith.constant 0 : index
    %0 = vector.load %arg3[%c0, %c0_0] : memref<3x4xf32, #tpu.memory_space<vmem>>, vector<3x4xf32>
    %c0_1 = arith.constant 0 : index
    %c0_2 = arith.constant 0 : index
    %c0_3 = arith.constant 0 : index
    %1 = vector.load %arg2[%c0_1, %c0_2, %c0_3] : memref<1x4x256xf32, #tpu.memory_space<vmem>>, vector<1x4x256xf32>
    %2 = vector.shape_cast %1 : vector<1x4x256xf32> to vector<4x256xf32>
    %cst = arith.constant dense<0.000000e+00> : vector<3x256xf32>
    %3 = tpu.matmul %0, %2, %cst {dimension_numbers = #tpu.dot_dimension_numbers<[1], [0], [0], [1], [0, 0, 1, 1], [], []>} : vector<3x4xf32>, vector<4x256xf32>, vector<3x256xf32> -> vector<3x256xf32>
    %c0_4 = arith.constant 0 : index
    %c0_5 = arith.constant 0 : index
    %c0_6 = arith.constant 0 : index
    %4 = vector.load %arg4[%c0_4, %c0_5, %c0_6] : memref<1x3x256xf32, #tpu.memory_space<vmem>>, vector<1x3x256xf32>
    %5 = vector.shape_cast %4 : vector<1x3x256xf32> to vector<3x256xf32>
    %6 = vector.shape_cast %3 : vector<3x256xf32> to vector<1x3x256xf32>
    tpu.vector_store %arg4[%c0_4, %c0_5, %c0_6], %6 {strides = array<i32>} : memref<1x3x256xf32, #tpu.memory_space<vmem>>, vector<1x3x256xf32>,
    return
  }
  func.func @transform_0(%arg0: i32, %arg1: i32) -> (i32, i32, i32) {
    %c0_i32 = arith.constant 0 : i32
    %c0_i32_0 = arith.constant 0 : i32
    return %arg0, %c0_i32, %arg1 : i32, i32, i32
  }
  func.func @transform_1(%arg0: i32, %arg1: i32) -> (i32, i32) {
    %c0_i32 = arith.constant 0 : i32
    %c0_i32_0 = arith.constant 0 : i32
    %c0_i32_1 = arith.constant 0 : i32
    return %c0_i32, %c0_i32_0 : i32, i32
  }
  func.func @transform_2(%arg0: i32, %arg1: i32) -> (i32, i32, i32) {
    %c0_i32 = arith.constant 0 : i32
    %c0_i32_0 = arith.constant 0 : i32
    return %arg0, %c0_i32, %arg1 : i32, i32, i32
  }
}

</mosaic_0001>

<llo_original>
// kernel: tpu_custom_call.1
$region0: #{tpu_custom_call.1}
  #allocation0 [shape = 'u32[]', space=smem, size = 0x4, offset = 0x4, fixed_abs, tag = 'smem constant byte address 0x4 - core index']
  #allocation1 [shape = 'u32[144,128]{1,0:T(1,128)}', space=vmem, size = 0x12000, scoped, tag = 'internal scratch']
  %s0 = inlined_call_operand.hbm [shape: f32[2,4,256], index: 0, kind: input, shape index: {}]
  %s1 = inlined_call_operand.hbm [shape: f32[3,4], index: 1, kind: input, shape index: {}]
  %s2 = inlined_call_operand.vmem [shape: f32[2,3,256], index: 2, kind: output, shape index: {}]
  %s3 = sld [smem:[#allocation0]]
  $region49: #{tpu_custom_call.1} parent=0
    _
  %s5 = ssub.s32 1, %s3
  %s6 = scalar_select 0, %s5, %s3
  $region1: #{tpu_custom_call.1} parent=0
    #allocation2 [shape = 'u8[8192]{0}', space=vmem, size = 0x2000, scoped, tag = 'input window, operand 0']
    #allocation3 [shape = 's32[2]{0}', space=sflag, size = 0x8, scoped, tag = 'scoped memory for tpu_custom_call.1']
    #allocation4 [shape = 'u8[2048]{0}', space=vmem, size = 0x800, scoped, tag = 'input window, operand 1, single buffered']
    #allocation5 [shape = 's32[1]{0}', space=sflag, size = 0x4, scoped, tag = 'scoped memory for tpu_custom_call.1']
    %7 = vsyncpa [#allocation3], 0
    %s8 = scalar_lea.sflag [#allocation3], 1
    %9 = vsyncpa %s8, 0
    %10 = vsyncpa [#allocation5], 0
    loop: start=0, step=1, limit=4
    $region2: #{tpu_custom_call.1} parent=1 // loop_pre_header
      _
    $region3: #{tpu_custom_call.1} parent=1 // loop_header
      %s12 = sphi 0, %s16
      %p13 = scmp.ge.s32.totalorder %s12, 4
      %s19 = sphi 0, %s31
      %s20 = sphi 0, %s27
      %s21 = sphi 0, %s19
      %s22 = sphi 0, %s20
      %s23 = sphi 0, %s21
      %s24 = sphi 0, %s22
      %s36 = sphi 0, %s38
      %s39 = sphi 0, %s36
      %s40 = sphi 0, %s39
      %s56 = sphi 0, %s40
      %s60 = sphi 0, %s60
      %s62 = sphi 0, %s60
      %s63 = sphi 0, %s62
      %s77 = sphi 0, %s63
      %s85 = sphi 0, %s87
      %s88 = sphi 0, %s85
      %s89 = sphi 0, %s88
      %s105 = sphi 0, %s89
    $region4: #{tpu_custom_call.1} parent=1 // loop_header_branch
      %15 = sbr.rel (%p13) target = $region8
    $region5: #{tpu_custom_call.1} parent=1 // loop_body
      %s17 = ssub.s32 %s12, 1
      %s18 = ssub.s32 %s12, 2
      %s25 = sadd.s32 1, %s20
      %p26 = scmp.ge.s32.totalorder %s25, 1
      %s27 = scalar_select %p26, 0, %s25
      %s28 = sadd.s32 1, %s19
      %s29 = scalar_select %p26, %s28, %s19
      %p30 = scmp.ge.s32.totalorder %s29, 2
      %s31 = scalar_select %p30, 0, %s29
      %s32 = ssub.s32 %s19, %s31
      %s33 = ssub.s32 %s20, %s27
      %s34 = sor.u32 %s32, %s33
      %p35 = scmp.eq.s32.totalorder %s34, 0
      %s37 = sadd.s32 %s36, 1
      %s38 = scalar_select %p35, %s36, %s37
      %p41 = pneg %p35
      %p42 = scmp.eq.s32.totalorder %s12, 1
      %p43 = por %p41, %p42
      %p44 = scmp.ne.s32.totalorder %s36, %s39
      %p45 = scmp.eq.s32.totalorder %s12, 0
      %p46 = por %p44, %p45
      %p47 = scmp.ne.s32.totalorder %s36, %s39
      %p48 = scmp.eq.s32.totalorder %s17, 1
      %p49 = por %p47, %p48
      %p50 = scmp.ne.s32.totalorder %s39, %s40
      %p51 = scmp.eq.s32.totalorder %s17, 0
      %p52 = por %p50, %p51
      %p53 = scmp.ne.s32.totalorder %s39, %s40
      %p54 = scmp.eq.s32.totalorder %s18, 1
      %p55 = por %p53, %p54
      %p57 = scmp.ne.s32.totalorder %s40, %s56
      %p58 = scmp.eq.s32.totalorder %s18, 0
      %p59 = por %p57, %p58
      %s61 = sadd.s32 %s60, 1
      %p64 = scmp.eq.s32.totalorder %s12, 1
      %p65 = scmp.ne.s32.totalorder %s60, %s62
      %p66 = scmp.eq.s32.totalorder %s12, 0
      %p67 = por %p65, %p66
      %p68 = scmp.ne.s32.totalorder %s60, %s62
      %p69 = scmp.eq.s32.totalorder %s17, 1
      %p70 = por %p68, %p69
      %p71 = scmp.ne.s32.totalorder %s62, %s63
      %p72 = scmp.eq.s32.totalorder %s17, 0
      %p73 = por %p71, %p72
      %p74 = scmp.ne.s32.totalorder %s62, %s63
      %p75 = scmp.eq.s32.totalorder %s18, 1
      %p76 = por %p74, %p75
      %p78 = scmp.ne.s32.totalorder %s63, %s77
      %p79 = scmp.eq.s32.totalorder %s18, 0
      %p80 = por %p78, %p79
      %s81 = ssub.s32 %s19, %s31
      %s82 = ssub.s32 %s20, %s27
      %s83 = sor.u32 %s81, %s82
      %p84 = scmp.eq.s32.totalorder %s83, 0
      %s86 = sadd.s32 %s85, 1
      %s87 = scalar_select %p84, %s85, %s86
      %p90 = pneg %p84
      %p91 = scmp.eq.s32.totalorder %s12, 1
      %p92 = por %p90, %p91
      %p93 = scmp.ne.s32.totalorder %s85, %s88
      %p94 = scmp.eq.s32.totalorder %s12, 0
      %p95 = por %p93, %p94
      %p96 = scmp.ne.s32.totalorder %s85, %s88
      %p97 = scmp.eq.s32.totalorder %s17, 1
      %p98 = por %p96, %p97
      %p99 = scmp.ne.s32.totalorder %s88, %s89
      %p100 = scmp.eq.s32.totalorder %s17, 0
      %p101 = por %p99, %p100
      %p102 = scmp.ne.s32.totalorder %s88, %s89
      %p103 = scmp.eq.s32.totalorder %s18, 1
      %p104 = por %p102, %p103
      %p106 = scmp.ne.s32.totalorder %s89, %s105
      %p107 = scmp.eq.s32.totalorder %s18, 0
      %p108 = por %p106, %p107
      %p109 = scmp.le.s32.totalorder 1, %s12
      %p110 = scmp.lt.s32.totalorder %s12, 3
      %p111 = pnand %p109, %p110
      %p112 = pneg %p111
      // Predicated region
      $region9: #{tpu_custom_call.1} parent=5 // pred_check
        _
      $region10: #{tpu_custom_call.1} parent=5 // pred_check_branch
        %114 = sbr.rel (%p111) target = $region12
      $region11: #{tpu_custom_call.1} parent=5 // pred_region
        %s115 = ssub.s32 %s12, 1
        // Predicated region
        $region13: #{tpu_custom_call.1} parent=11 // pred_check
          %p116 = pneg %p73
        $region14: #{tpu_custom_call.1} parent=11 // pred_check_branch
          %118 = sbr.rel (%p116) target = $region16
        $region15: #{tpu_custom_call.1} parent=11 // pred_region
          %s120 = ssub.s32 64, 64
          %121 = vsyncadd [#allocation5], %s120
          %s123 = sshll.u32 [#allocation4], 4
          %s124 = int_to_ptr.vmem [resolvable:$true] %s123
          %126 = dma.hbm_to_vmem [thread:$0]  %s1, 64, %s124, [#allocation5]
        $region16: #{tpu_custom_call.1} parent=11 // pred_fallthru
          _
      $region12: #{tpu_custom_call.1} parent=5 // pred_fallthru
        _
      %p127 = scmp.lt.s32.totalorder %s12, 2
      // Predicated region
      $region17: #{tpu_custom_call.1} parent=5 // pred_check
        %p128 = pneg %p127
      $region18: #{tpu_custom_call.1} parent=5 // pred_check_branch
        %130 = sbr.rel (%p128) target = $region20
      $region19: #{tpu_custom_call.1} parent=5 // pred_region
        // Predicated region
        $region21: #{tpu_custom_call.1} parent=19 // pred_check
          %p131 = pneg %p46
        $region22: #{tpu_custom_call.1} parent=19 // pred_check_branch
          %133 = sbr.rel (%p131) target = $region24
        $region23: #{tpu_custom_call.1} parent=19 // pred_region
          %s134 = sand.u32 %s36, 1
          %s135 = scalar_lea.sflag [#allocation3], %s134
          %s136 = sand.u32 %s36, 1
          %s137 = smul.addr %s136, 8
          %s138 = scalar_lea.vmem [#allocation2], %s137
          %s139 = smul.u32 2, %s20
          %s141 = ssub.s32 128, 128
          %142 = vsyncadd %s135, %s141
          %s143 = smul.addr %s19, 2
          %s144 = sadd.s32 %s139, %s143
          %s145 = smul.addr %s144, 64
          %s146 = scalar_lea.hbm %s0, %s145
          %s148 = sshll.u32 %s138, 4
          %s149 = int_to_ptr.vmem [resolvable:$true] %s148
          %151 = dma.hbm_to_vmem [thread:$0]  %s146, 128, %s149, %s135
        $region24: #{tpu_custom_call.1} parent=19 // pred_fallthru
          _
      $region20: #{tpu_custom_call.1} parent=5 // pred_fallthru
        _
      %p152 = scmp.le.s32.totalorder 1, %s12
      %p153 = scmp.lt.s32.totalorder %s12, 3
      %p154 = pnand %p152, %p153
      %p155 = pneg %p154
      // Predicated region
      $region25: #{tpu_custom_call.1} parent=5 // pred_check
        _
      $region26: #{tpu_custom_call.1} parent=5 // pred_check_branch
        %157 = sbr.rel (%p154) target = $region28
      $region27: #{tpu_custom_call.1} parent=5 // pred_region
        %s158 = ssub.s32 %s12, 1
        %s159 = sand.u32 %s39, 1
        %s160 = scalar_lea.sflag [#allocation3], %s159
        %s161 = sand.u32 %s39, 1
        %s162 = smul.addr %s161, 8
        %s163 = scalar_lea.vmem [#allocation2], %s162
        // Predicated region
        $region29: #{tpu_custom_call.1} parent=27 // pred_check
          %p164 = pneg %p52
        $region30: #{tpu_custom_call.1} parent=27 // pred_check_branch
          %166 = sbr.rel (%p164) target = $region32
        $region31: #{tpu_custom_call.1} parent=27 // pred_region
          %167 = dma.done %s160, 128
        $region32: #{tpu_custom_call.1} parent=27 // pred_fallthru
          _
        // Predicated region
        $region33: #{tpu_custom_call.1} parent=27 // pred_check
          %p168 = pneg %p73
        $region34: #{tpu_custom_call.1} parent=27 // pred_check_branch
          %170 = sbr.rel (%p168) target = $region36
        $region35: #{tpu_custom_call.1} parent=27 // pred_region
          %171 = dma.done [#allocation5], 64
        $region36: #{tpu_custom_call.1} parent=27 // pred_fallthru
          _
        %s172 = sand.u32 %s39, 1
        %s173 = scalar_lea.sflag [#allocation3], %s172
        %s174 = sand.u32 %s39, 1
        %s175 = smul.addr %s174, 8
        %s176 = scalar_lea.vmem [#allocation2], %s175
        %p177 = pneg %p52
        %p178 = pneg %p49
        %p179 = pneg %p73
        %p180 = pneg %p70
        %p181 = pneg %p101
        %p182 = pneg %p98
        %s183 = smul.u32 2, %s22
        %p184 = scmp.lt.s32.totalorder %s21, 1
        %s185 = scalar_select %p184, %s21, 1
        %p186 = scmp.lt.s32.totalorder %s183, 1
        %s187 = scalar_select %p186, %s183, 1
        %s188 = smul.addr %s185, 2
        %s189 = sadd.s32 %s187, %s188
        %s190 = smul.addr %s189, 4
        %s191 = scalar_lea.vmem %s2, %s190
        %s192 = smul.u32 2, %s22
        %s193 = smul.u32 2, %s22
        %p194 = scmp.lt.s32.totalorder %s21, 1
        %s195 = scalar_select %p194, %s21, 1
        %p196 = scmp.lt.s32.totalorder %s193, 1
        %s197 = scalar_select %p196, %s193, 1
        %s198 = smul.addr %s195, 2
        %s199 = sadd.s32 %s197, %s198
        %s200 = smul.addr %s199, 4
        %s201 = scalar_lea.vmem %s2, %s200
        %s202 = smul.u32 2, %s22
        %v203 = vld [vmem:[#allocation4] sm:$0x7]
        %v204 = vld [vmem:[%s163] sm:$0xff]
        %v206 = vcombine.high %v204, %v204
        %vm207 = vcmask 31744
        %v209 = vsel %vm207, %v203, 0
        %vm211 = vcmask 1043456
        %v212 = vsel %vm211, %v204, 0
        %v214 = vsel %vm211, %v206, 0
        %216 = vmatprep.subr.mxu0 %v214
        %217 = vmatpush1.msra.mxu0 %v212
        %218 = vmatprep.subr.mxu0 0.0
        %219 = vmatpush1.msra.mxu0 0.0
        %220 = vmatprep.subr.mxu0 0.0
        %221 = vmatpush1.msra.mxu0 0.0
        %222 = vmatprep.subr.mxu0 0.0
        %223 = vmatpush1.msra.mxu0 0.0
        %224 = vmatprep.subr.mxu0 0.0
        %225 = vmatpush1.msra.mxu0 0.0
        %226 = vmatprep.subr.mxu0 0.0
        %227 = vmatpush1.msra.mxu0 0.0
        %228 = vmatprep.subr.mxu0 0.0
        %229 = vmatpush1.msra.mxu0 0.0
        %230 = vmatprep.subr.mxu0 0.0
        %231 = vmatpush1.msra.mxu0 0.0
        %232 = vmatprep.subr.mxu0 0.0
        %233 = vmatpush1.msra.mxu0 0.0
        %234 = vmatprep.subr.mxu0 0.0
        %235 = vmatpush1.msra.mxu0 0.0
        %236 = vmatprep.subr.mxu0 0.0
        %237 = vmatpush1.msra.mxu0 0.0
        %238 = vmatprep.subr.mxu0 0.0
        %239 = vmatpush1.msra.mxu0 0.0
        %240 = vmatprep.subr.mxu0 0.0
        %241 = vmatpush1.msra.mxu0 0.0
        %242 = vmatprep.subr.mxu0 0.0
        %243 = vmatpush1.msra.mxu0 0.0
        %244 = vmatprep.subr.mxu0 0.0
        %245 = vmatpush1.msra.mxu0 0.0
        %246 = vmatprep.subr.mxu0 0.0
        %247 = vmatpush1.msra.mxu0 0.0
        %248 = vmatprep.subr.mxu0 0.0
        %249 = vmatpush1.msra.mxu0 0.0
        %250 = vmatprep.subr.mxu0 0.0
        %251 = vmatpush1.msra.mxu0 0.0
        %252 = vmatprep.subr.mxu0 0.0
        %253 = vmatpush1.msra.mxu0 0.0
        %254 = vmatprep.subr.mxu0 0.0
        %255 = vmatpush1.msra.mxu0 0.0
        %256 = vmatprep.subr.mxu0 0.0
        %257 = vmatpush1.msra.mxu0 0.0
        %258 = vmatprep.subr.mxu0 0.0
        %259 = vmatpush1.msra.mxu0 0.0
        %260 = vmatprep.subr.mxu0 0.0
        %261 = vmatpush1.msra.mxu0 0.0
        %262 = vmatprep.subr.mxu0 0.0
        %263 = vmatpush1.msra.mxu0 0.0
        %264 = vmatprep.subr.mxu0 0.0
        %265 = vmatpush1.msra.mxu0 0.0
        %266 = vmatprep.subr.mxu0 0.0
        %267 = vmatpush1.msra.mxu0 0.0
        %268 = vmatprep.subr.mxu0 0.0
        %269 = vmatpush1.msra.mxu0 0.0
        %270 = vmatprep.subr.mxu0 0.0
        %271 = vmatpush1.msra.mxu0 0.0
        %272 = vmatprep.subr.mxu0 0.0
        %273 = vmatpush1.msra.mxu0 0.0
        %274 = vmatprep.subr.mxu0 0.0
        %275 = vmatpush1.msra.mxu0 0.0
        %276 = vmatprep.subr.mxu0 0.0
        %277 = vmatpush1.msra.mxu0 0.0
        %278 = vmatprep.subr.mxu0 0.0
        %279 = vmatpush1.msra.mxu0 0.0
        %280 = vmatprep.mubr.f32.mxu0 0.0
        %281 = vmatmul.mubr.f32.gmra.mrb[0].mxu0 %v209
        %v282 = vpop.f32.mrb[0].mxu0
        %v283 = vadd.f32 0.0, %v282
        %v284 = vpop.f32.mrb[0].mxu0
        %v285 = vadd.f32 0.0, %v284
        %286 = vdwg.mxu0
        %v289 = vcombine.low %v283, %v285
        %291 = vst [vmem:[%s201] sm:$0x77] %v289
        %s292 = smul.u32 2, %s22
        %p293 = scmp.lt.s32.totalorder %s21, 1
        %s294 = scalar_select %p293, %s21, 1
        %p295 = scmp.lt.s32.totalorder %s292, 1
        %s296 = scalar_select %p295, %s292, 1
        %s297 = smul.addr %s294, 2
        %s298 = sadd.s32 %s296, %s297
        %s299 = smul.addr %s298, 4
        %s300 = scalar_lea.vmem %s2, %s299
        // Predicated region
        $region37: #{tpu_custom_call.1} parent=27 // pred_check
          %p301 = pneg %p98
        $region38: #{tpu_custom_call.1} parent=27 // pred_check_branch
          %303 = sbr.rel (%p301) target = $region40
        $region39: #{tpu_custom_call.1} parent=27 // pred_region
          %s304 = smul.u32 2, %s22
        $region40: #{tpu_custom_call.1} parent=27 // pred_fallthru
          _
      $region28: #{tpu_custom_call.1} parent=5 // pred_fallthru
        _
      %p305 = scmp.le.s32.totalorder 2, %s12
      // Predicated region
      $region41: #{tpu_custom_call.1} parent=5 // pred_check
        %p306 = pneg %p305
      $region42: #{tpu_custom_call.1} parent=5 // pred_check_branch
        %308 = sbr.rel (%p306) target = $region44
      $region43: #{tpu_custom_call.1} parent=5 // pred_region
        %s309 = ssub.s32 %s12, 2
        // Predicated region
        $region45: #{tpu_custom_call.1} parent=43 // pred_check
          %p310 = pneg %p104
        $region46: #{tpu_custom_call.1} parent=43 // pred_check_branch
          %312 = sbr.rel (%p310) target = $region48
        $region47: #{tpu_custom_call.1} parent=43 // pred_region
          %s313 = smul.u32 2, %s24
          %p314 = scmp.lt.s32.totalorder %s23, 1
          %s315 = scalar_select %p314, %s23, 1
          %p316 = scmp.lt.s32.totalorder %s313, 1
          %s317 = scalar_select %p316, %s313, 1
          %s318 = smul.addr %s315, 2
          %s319 = sadd.s32 %s317, %s318
          %s320 = smul.addr %s319, 4
          %s321 = scalar_lea.vmem %s2, %s320
        $region48: #{tpu_custom_call.1} parent=43 // pred_fallthru
          _
      $region44: #{tpu_custom_call.1} parent=5 // pred_fallthru
        _
    $region6: #{tpu_custom_call.1} parent=1 // loop_footer
      %s16 = sadd.s32 1, %s12
    $region7: #{tpu_custom_call.1} parent=1 // loop_footer_branch
      %11 = sbr.rel target = $region3
    $region8: #{tpu_custom_call.1} parent=1 // loop_exit
      _
    %322 = vsyncpa [#allocation3], 1
    %s323 = scalar_lea.sflag [#allocation3], 1
    %324 = vsyncpa %s323, 1
    %325 = vsyncpa [#allocation5], 1

</llo_original>
